<compile_context>
chip_gen: v6e
topology: v6e:2x2x1
jax: 0.10.0
libtpu: 0.0.40
codegen_flags: <defaults>
</compile_context>

<pallas_src>
import math
from functools import partial

import jax
import jax.numpy as jnp
from jax.experimental import pallas as pl
from jax.experimental.pallas import tpu as pltpu

_GELU_C = math.sqrt(2.0 / math.pi)


def _convt_gelu_kernel(x_ref, w_ref, b_ref, o_ref, acc_ref):
    """Fused 3-tap-accumulated matmul + bias + tanh-GELU for one row tile.

    x_ref  : ((TR+2)*W, 3*Cin)   halo'd row tile; row = (mm, k), col = (tw, ic)
    w_ref  : (3, 3*Cin, 4*Cout)  per-vertical-tap weights; col = (ph, pw, oc)
    b_ref  : (1, 4*Cout)         bias tiled over (ph, pw)
    o_ref  : (TR, 2, W, 2*Cout)  flat element order (m, ph, k, pw, oc)
    acc_ref: (TR*W, 4*Cout) f32  VMEM accumulator (persistent scratch)
    """
    tr, _, w, c2 = o_ref.shape
    mw = tr * w
    # Vertical-tap accumulation: aligned, contiguous leading-dim slices only.
    for th in range(3):
        xs = x_ref[th * w:th * w + mw, :]                 # (TR*W, 3*Cin), static & 8-aligned
        contrib = jnp.dot(xs, w_ref[th], preferred_element_type=jnp.float32)
        if th == 0:
            acc_ref[...] = contrib                        # re-init each grid step
        else:
            acc_ref[...] += contrib
    y = acc_ref[...] + b_ref[...]                         # bias added once
    y = 0.5 * y * (1.0 + jnp.tanh(_GELU_C * (y + 0.044715 * y * y * y)))
    # Split the 4*Cout columns by output-row parity ph; the reshapes only split
    # the leading (row) dim, so no lane relayout is required.
    o_ref[:, 0, :, :] = y[:, :c2].reshape(tr, w, c2).astype(o_ref.dtype)
    o_ref[:, 1, :, :] = y[:, c2:].reshape(tr, w, c2).astype(o_ref.dtype)


@partial(jax.jit, static_argnames=("compute_dtype",))
def upsample_reshape_eval(x1, x2, weight, bias, compute_dtype=jnp.float32):
    """x1, x2: NCHW float32; weight: (Cin, Cout, 4, 4) PyTorch ConvTranspose2d layout.

    compute_dtype: jnp.float32 (default, small channels / v5e) or jnp.bfloat16
    (v6e/v7x production setting; accumulation stays f32 on the MXU).
    """
    N, Cin, H, W = x2.shape
    Cout = weight.shape[1]
    H2, W2 = 2 * H, 2 * W

    # ---- horizontal-tap gather: K = 3*Cin (fuses into one XLA op) -----------
    x_nhwc = jnp.transpose(x2, (0, 2, 3, 1))
    xp = jnp.pad(x_nhwc, ((0, 0), (1, 1), (1, 1), (0, 0)))          # (N, H+2, W+2, Cin)
    xw = jnp.stack([xp[:, :, tw:tw + W, :] for tw in range(3)], axis=3)
    xw = xw.reshape(N, H + 2, W, 3 * Cin)                           # (N, H+2, W, 3*Cin)

    # ---- row tiling: TR output rows per grid step ---------------------------
    x_bytes = jnp.dtype(compute_dtype).itemsize
    TR = H

    def _blk_bytes(tr):
        return max((tr + 2) * W * 3 * Cin * x_bytes,                # X block
                   tr * W * 4 * Cout * 4)                           # out / acc block (f32)

    while TR % 2 == 0 and _blk_bytes(TR) > (2 << 20):               # v5e/v7x scoped-VMEM safe
        TR //= 2
    if N * (H // TR) < 2 and TR % 2 == 0:                           # keep v7x's 2nd core busy
        TR //= 2
    NT = H // TR
    NB = N * NT

    # Overlapping (TR+2)-row tiles: only the 2 halo rows per tile are duplicated
    # (vs. the 9x duplication of a full im2col).
    xt = jnp.stack([xw[:, t * TR:t * TR + TR + 2] for t in range(NT)], axis=1)
    x3 = xt.reshape(NB, (TR + 2) * W, 3 * Cin).astype(compute_dtype)

    # ---- per-vertical-tap weights (3, 3*Cin, 4*Cout), cols ordered (ph,pw,oc)
    # out[n, 2m+ph, 2k+pw, oc] = sum_{th,tw,ic} xpad[n, m+th, k+tw, ic]
    #                                   * weight[ic, oc, 3+ph-2*th, 3+pw-2*tw]
    # with the kernel index valid only when it lies in [0, 3].
    t3 = jnp.arange(3)
    p2 = jnp.arange(2)
    kidx = 3 + p2[None, :] - 2 * t3[:, None]                        # (tap, parity)
    valid = (kidx >= 0) & (kidx <= 3)
    kclip = jnp.clip(kidx, 0, 3)
    wg = weight[:, :, kclip[:, :, None, None], kclip[None, None, :, :]]
    wmask = (valid[:, :, None, None] & valid[None, None, :, :]).astype(weight.dtype)
    wg = wg * wmask[None, None]                                     # (Cin, Cout, th, ph, tw, pw)
    w3 = jnp.transpose(wg, (2, 4, 0, 3, 5, 1)).reshape(3, 3 * Cin, 4 * Cout)
    w3 = w3.astype(compute_dtype)
    b_comb = jnp.tile(bias, 4).reshape(1, 4 * Cout).astype(jnp.float32)

    out = pl.pallas_call(
        _convt_gelu_kernel,
        out_shape=jax.ShapeDtypeStruct((N * H, 2, W, 2 * Cout), jnp.float32),
        grid=(NB,),
        in_specs=[
            pl.BlockSpec((None, (TR + 2) * W, 3 * Cin), lambda i: (i, 0, 0)),
            pl.BlockSpec((3, 3 * Cin, 4 * Cout), lambda i: (0, 0, 0)),
            pl.BlockSpec((1, 4 * Cout), lambda i: (0, 0)),
        ],
        out_specs=pl.BlockSpec((TR, 2, W, 2 * Cout), lambda i: (i, 0, 0, 0)),
        scratch_shapes=[pltpu.VMEM((TR * W, 4 * Cout), jnp.float32)],
        compiler_params=pltpu.CompilerParams(dimension_semantics=("parallel",)),
    )(x3, w3, b_comb)

    # Flat order is already (n, 2m+ph, 2k+pw, oc): interleave is a pure reshape.
    up = out.reshape(N, H2, W2, Cout)

    # ---- reflection pad to x1's spatial size (floor on the leading side) ----
    H1, W1 = x1.shape[2], x1.shape[3]
    lr, tb = W1 - W2, H1 - H2
    left, right = lr // 2, lr - lr // 2
    top, bot = tb // 2, tb - tb // 2
    if (left, right, top, bot) != (0, 0, 0, 0):
        up = jnp.pad(up, ((0, 0), (top, bot), (left, right), (0, 0)), mode="reflect")

    return jnp.transpose(up, (0, 3, 1, 2))                          # back to NCHW


def _reference(x1, x2, weight, bias):
    """Pure-JAX reference: ConvTranspose2d == dilated conv with flipped kernel."""
    x2_nhwc = jnp.transpose(x2, (0, 2, 3, 1))
    w_flip = jnp.transpose(weight[:, :, ::-1, ::-1], (2, 3, 0, 1))   # HWIO
    y = jax.lax.conv_general_dilated(
        x2_nhwc, w_flip, window_strides=(1, 1), padding=((2, 2), (2, 2)),
        lhs_dilation=(2, 2), dimension_numbers=("NHWC", "HWIO", "NHWC"))
    y = y + bias[None, None, None, :]
    y = 0.5 * y * (1.0 + jnp.tanh(_GELU_C * (y + 0.044715 * y ** 3)))
    H1, W1 = x1.shape[2], x1.shape[3]
    H2, W2 = y.shape[1], y.shape[2]
    lr, tb = W1 - W2, H1 - H2
    left, right = lr // 2, lr - lr // 2
    top, bot = tb // 2, tb - tb // 2
    if (left, right, top, bot) != (0, 0, 0, 0):
        y = jnp.pad(y, ((0, 0), (top, bot), (left, right), (0, 0)), mode="reflect")
    return jnp.transpose(y, (0, 3, 1, 2))


if __name__ == "__main__":
    key = jax.random.PRNGKey(0)
    k1, k2, k3, k4 = jax.random.split(key, 4)

    in_channels, out_channels = 4, 4
    # x1 only supplies the target spatial shape; x2 is upsampled 8x8 -> 16x16,
    # then reflection-padded to 18x18.
    x1 = jax.random.normal(k1, (2, out_channels, 18, 18), jnp.float32)
    x2 = jax.random.normal(k2, (2, in_channels, 8, 8), jnp.float32)

    # Deterministic synthetic parameters (PyTorch ConvTranspose2d shapes).
    weight = 0.1 * jax.random.normal(k3, (in_channels, out_channels, 4, 4), jnp.float32)
    bias = 0.1 * jax.random.normal(k4, (out_channels,), jnp.float32)

    ref = _reference(x1, x2, weight, bias)

    # f32 operand path (small channel counts / v5e): tight tolerance.
    out = jax.block_until_ready(upsample_reshape_eval(x1, x2, weight, bias))
    assert out.shape == (2, out_channels, 18, 18), out.shape
    assert jnp.allclose(out, ref, atol=1e-4, rtol=1e-4), float(jnp.max(jnp.abs(out - ref)))

    # bf16 operand path (v6e/v7x production setting, f32 accumulation): the
    # review recommends loosening the test tolerance rather than the kernel.
    out_bf16 = jax.block_until_ready(
        upsample_reshape_eval(x1, x2, weight, bias, compute_dtype=jnp.bfloat16))
    assert jnp.allclose(out_bf16, ref, atol=5e-2, rtol=5e-2), \
        float(jnp.max(jnp.abs(out_bf16 - ref)))

    print("KERNEL_OK")
</pallas_src>

<mosaic_0001>
module attributes {stable_mosaic.version = 11 : i64} {
  func.func @_convt_gelu_kernel(%arg0: i32, %arg1: memref<1x80x12xf32, #tpu.memory_space<vmem>>, %arg2: memref<3x12x16xf32, #tpu.memory_space<vmem>>, %arg3: memref<1x16xf32, #tpu.memory_space<vmem>>, %arg4: memref<8x2x8x8xf32, #tpu.memory_space<vmem>>, %arg5: memref<64x16xf32, #tpu.memory_space<vmem>>) attributes {dimension_semantics = [#tpu.dimension_semantics<parallel>], iteration_bounds = array<i64: 2>, scalar_prefetch = 0 : i64, scratch_operands = 1 : i64, tpu.core_type = #tpu.core_type<tc>, window_params = [{transform_indices = @transform_0, window_bounds = array<i64: 1, 80, 12>}, {pipeline_mode = #tpu.pipeline_mode<synchronous>, transform_indices = @transform_1, window_bounds = array<i64: 3, 12, 16>}, {pipeline_mode = #tpu.pipeline_mode<synchronous>, transform_indices = @transform_2, window_bounds = array<i64: 1, 16>}, {transform_indices = @transform_3, window_bounds = array<i64: 8, 2, 8, 8>}]} {
    %c0 = arith.constant 0 : index
    %c0_0 = arith.constant 0 : index
    %c0_1 = arith.constant 0 : index
    %0 = vector.load %arg1[%c0, %c0_0, %c0_1] : memref<1x80x12xf32, #tpu.memory_space<vmem>>, vector<1x64x12xf32>
    %1 = vector.shape_cast %0 : vector<1x64x12xf32> to vector<64x12xf32>
    %c0_2 = arith.constant 0 : index
    %c0_3 = arith.constant 0 : index
    %c0_4 = arith.constant 0 : index
    %2 = vector.load %arg2[%c0_2, %c0_3, %c0_4] : memref<3x12x16xf32, #tpu.memory_space<vmem>>, vector<1x12x16xf32>
    %3 = vector.shape_cast %2 : vector<1x12x16xf32> to vector<12x16xf32>
    %cst = arith.constant dense<0.000000e+00> : vector<64x16xf32>
    %4 = tpu.matmul %1, %3, %cst {dimension_numbers = #tpu.dot_dimension_numbers<[1], [0], [0], [1], [0, 0, 1, 1], [], []>} : vector<64x12xf32>, vector<12x16xf32>, vector<64x16xf32> -> vector<64x16xf32>
    %c0_5 = arith.constant 0 : index
    %c0_6 = arith.constant 0 : index
    %5 = vector.load %arg5[%c0_5, %c0_6] : memref<64x16xf32, #tpu.memory_space<vmem>>, vector<64x16xf32>
    tpu.vector_store %arg5[%c0_5, %c0_6], %4 {strides = array<i32>} : memref<64x16xf32, #tpu.memory_space<vmem>>, vector<64x16xf32>,
    %c0_7 = arith.constant 0 : index
    %c8 = arith.constant 8 : index
    %c0_8 = arith.constant 0 : index
    %6 = vector.load %arg1[%c0_7, %c8, %c0_8] : memref<1x80x12xf32, #tpu.memory_space<vmem>>, vector<1x64x12xf32>
    %7 = vector.shape_cast %6 : vector<1x64x12xf32> to vector<64x12xf32>
    %c1 = arith.constant 1 : index
    %c0_9 = arith.constant 0 : index
    %c0_10 = arith.constant 0 : index
    %8 = vector.load %arg2[%c1, %c0_9, %c0_10] : memref<3x12x16xf32, #tpu.memory_space<vmem>>, vector<1x12x16xf32>
    %9 = vector.shape_cast %8 : vector<1x12x16xf32> to vector<12x16xf32>
    %cst_11 = arith.constant dense<0.000000e+00> : vector<64x16xf32>
    %10 = tpu.matmul %7, %9, %cst_11 {dimension_numbers = #tpu.dot_dimension_numbers<[1], [0], [0], [1], [0, 0, 1, 1], [], []>} : vector<64x12xf32>, vector<12x16xf32>, vector<64x16xf32> -> vector<64x16xf32>
    %c0_12 = arith.constant 0 : index
    %c0_13 = arith.constant 0 : index
    %11 = vector.load %arg5[%c0_12, %c0_13] : memref<64x16xf32, #tpu.memory_space<vmem>>, vector<64x16xf32>
    %12 = arith.addf %11, %10 : vector<64x16xf32>
    %c0_14 = arith.constant 0 : index
    %c0_15 = arith.constant 0 : index
    %13 = vector.load %arg5[%c0_14, %c0_15] : memref<64x16xf32, #tpu.memory_space<vmem>>, vector<64x16xf32>
    tpu.vector_store %arg5[%c0_14, %c0_15], %12 {strides = array<i32>} : memref<64x16xf32, #tpu.memory_space<vmem>>, vector<64x16xf32>,
    %c0_16 = arith.constant 0 : index
    %c16 = arith.constant 16 : index
    %c0_17 = arith.constant 0 : index
    %14 = vector.load %arg1[%c0_16, %c16, %c0_17] : memref<1x80x12xf32, #tpu.memory_space<vmem>>, vector<1x64x12xf32>
    %15 = vector.shape_cast %14 : vector<1x64x12xf32> to vector<64x12xf32>
    %c2 = arith.constant 2 : index
    %c0_18 = arith.constant 0 : index
    %c0_19 = arith.constant 0 : index
    %16 = vector.load %arg2[%c2, %c0_18, %c0_19] : memref<3x12x16xf32, #tpu.memory_space<vmem>>, vector<1x12x16xf32>
    %17 = vector.shape_cast %16 : vector<1x12x16xf32> to vector<12x16xf32>
    %cst_20 = arith.constant dense<0.000000e+00> : vector<64x16xf32>
    %18 = tpu.matmul %15, %17, %cst_20 {dimension_numbers = #tpu.dot_dimension_numbers<[1], [0], [0], [1], [0, 0, 1, 1], [], []>} : vector<64x12xf32>, vector<12x16xf32>, vector<64x16xf32> -> vector<64x16xf32>
    %c0_21 = arith.constant 0 : index
    %c0_22 = arith.constant 0 : index
    %19 = vector.load %arg5[%c0_21, %c0_22] : memref<64x16xf32, #tpu.memory_space<vmem>>, vector<64x16xf32>
    %20 = arith.addf %19, %18 : vector<64x16xf32>
    %c0_23 = arith.constant 0 : index
    %c0_24 = arith.constant 0 : index
    %21 = vector.load %arg5[%c0_23, %c0_24] : memref<64x16xf32, #tpu.memory_space<vmem>>, vector<64x16xf32>
    tpu.vector_store %arg5[%c0_23, %c0_24], %20 {strides = array<i32>} : memref<64x16xf32, #tpu.memory_space<vmem>>, vector<64x16xf32>,
    %c0_25 = arith.constant 0 : index
    %c0_26 = arith.constant 0 : index
    %22 = vector.load %arg5[%c0_25, %c0_26] : memref<64x16xf32, #tpu.memory_space<vmem>>, vector<64x16xf32>
    %c0_27 = arith.constant 0 : index
    %c0_28 = arith.constant 0 : index
    %23 = vector.load %arg3[%c0_27, %c0_28] : memref<1x16xf32, #tpu.memory_space<vmem>>, vector<1x16xf32>
    %24 = vector.broadcast %23 : vector<1x16xf32> to vector<64x16xf32>
    %25 = arith.addf %22, %24 : vector<64x16xf32>
    %cst_29 = arith.constant 5.000000e-01 : f32
    %26 = vector.broadcast %cst_29 : f32 to vector<64x16xf32>
    %27 = arith.mulf %26, %25 : vector<64x16xf32>
    %cst_30 = arith.constant 4.471500e-02 : f32
    %28 = vector.broadcast %cst_30 : f32 to vector<64x16xf32>
    %29 = arith.mulf %28, %25 : vector<64x16xf32>
    %30 = arith.mulf %29, %25 : vector<64x16xf32>
    %31 = arith.mulf %30, %25 : vector<64x16xf32>
    %32 = arith.addf %25, %31 : vector<64x16xf32>
    %cst_31 = arith.constant 0.797884583 : f32
    %33 = vector.broadcast %cst_31 : f32 to vector<64x16xf32>
    %34 = arith.mulf %33, %32 : vector<64x16xf32>
    %35 = math.tanh %34 : vector<64x16xf32>
    %cst_32 = arith.constant 1.000000e+00 : f32
    %36 = vector.broadcast %cst_32 : f32 to vector<64x16xf32>
    %37 = arith.addf %36, %35 : vector<64x16xf32>
    %38 = arith.mulf %27, %37 : vector<64x16xf32>
    %39 = vector.extract_strided_slice %38 {offsets = [0, 0], sizes = [64, 8], strides = [1, 1]} : vector<64x16xf32> to vector<64x8xf32>
    %40 = vector.shape_cast %39 : vector<64x8xf32> to vector<8x8x8xf32>
    %c0_33 = arith.constant 0 : index
    %c0_34 = arith.constant 0 : index
    %c0_35 = arith.constant 0 : index
    %c0_36 = arith.constant 0 : index
    %41 = vector.load %arg4[%c0_33, %c0_34, %c0_35, %c0_36] : memref<8x2x8x8xf32, #tpu.memory_space<vmem>>, vector<8x1x8x8xf32>
    %42 = vector.shape_cast %41 : vector<8x1x8x8xf32> to vector<8x8x8xf32>
    %43 = vector.shape_cast %40 : vector<8x8x8xf32> to vector<8x1x8x8xf32>
    tpu.vector_store %arg4[%c0_33, %c0_34, %c0_35, %c0_36], %43 {strides = array<i32>} : memref<8x2x8x8xf32, #tpu.memory_space<vmem>>, vector<8x1x8x8xf32>,
    %44 = vector.extract_strided_slice %38 {offsets = [0, 8], sizes = [64, 8], strides = [1, 1]} : vector<64x16xf32> to vector<64x8xf32>
    %45 = vector.shape_cast %44 : vector<64x8xf32> to vector<8x8x8xf32>
    %c0_37 = arith.constant 0 : index
    %c1_38 = arith.constant 1 : index
    %c0_39 = arith.constant 0 : index
    %c0_40 = arith.constant 0 : index
    %46 = vector.load %arg4[%c0_37, %c1_38, %c0_39, %c0_40] : memref<8x2x8x8xf32, #tpu.memory_space<vmem>>, vector<8x1x8x8xf32>
    %47 = vector.shape_cast %46 : vector<8x1x8x8xf32> to vector<8x8x8xf32>
    %48 = vector.shape_cast %45 : vector<8x8x8xf32> to vector<8x1x8x8xf32>
    tpu.vector_store %arg4[%c0_37, %c1_38, %c0_39, %c0_40], %48 {strides = array<i32>} : memref<8x2x8x8xf32, #tpu.memory_space<vmem>>, vector<8x1x8x8xf32>,
    return
  }
  func.func @transform_0(%arg0: i32) -> (i32, i32, i32) {
    %c0_i32 = arith.constant 0 : i32
    %c0_i32_0 = arith.constant 0 : i32
    %c0_i32_1 = arith.constant 0 : i32
    return %arg0, %c0_i32, %c0_i32_0 : i32, i32, i32
  }
  func.func @transform_1(%arg0: i32) -> (i32, i32, i32) {
    %c0_i32 = arith.constant 0 : i32
    %c0_i32_0 = arith.constant 0 : i32
    %c0_i32_1 = arith.constant 0 : i32
    %c0_i32_2 = arith.constant 0 : i32
    return %c0_i32, %c0_i32_0, %c0_i32_1 : i32, i32, i32
  }
  func.func @transform_2(%arg0: i32) -> (i32, i32) {
    %c0_i32 = arith.constant 0 : i32
    %c0_i32_0 = arith.constant 0 : i32
    %c0_i32_1 = arith.constant 0 : i32
    return %c0_i32, %c0_i32_0 : i32, i32
  }
  func.func @transform_3(%arg0: i32) -> (i32, i32, i32, i32) {
    %c0_i32 = arith.constant 0 : i32
    %c0_i32_0 = arith.constant 0 : i32
    %c0_i32_1 = arith.constant 0 : i32
    %c0_i32_2 = arith.constant 0 : i32
    return %arg0, %c0_i32, %c0_i32_0, %c0_i32_1 : i32, i32, i32, i32
  }
}

</mosaic_0001>

<llo_original>
// kernel: tile.8
$region0: #{tile.8}
  #allocation0 [shape = 's32[1]{0}', space=sflag, size = 0x4, scoped, tag = 'scoped memory for tile.8']
  %s0 = inlined_call_operand.vmem [shape: f32[4], index: 0, kind: input, shape index: {}]
  %s1 = inlined_call_operand.vmem [shape: f32[4,4], index: 1, kind: output, shape index: {}]
  // Predicated region
  $region2: #{tile.8} parent=0 // pred_check
    _
  $region3: #{tile.8} parent=0 // pred_check_branch
    %3 = sbr.rel (0) target = $region5
  $region4: #{tile.8} parent=0 // pred_region
    _
  $region5: #{tile.8} parent=0 // pred_fallthru
    _
  %v4 = vld [vmem:[%s0] ss:$0 sm:$0xff]
  %5 = vst [vmem:[%s1] sm:$0xf] %v4

// kernel: tile.9
$region0: #{tile.9}
  %s0 = inlined_call_operand.vmem [shape: f32[4,4], index: 0, kind: input, shape index: {}]
  %s1 = inlined_call_operand.vmem [shape: f32[1,16], index: 1, kind: output, shape index: {}]
  $region1: #{tile.9} parent=0
    #allocation0 [shape = 'u8[4096]{0}', space=vmem, size = 0x1000, scoped, tag = 'scoped mem for output reshape']
    #allocation1 [shape = 'u8[4096]{0}', space=vmem, size = 0x1000, scoped, tag = 'scoped mem for input reshape']
    %s3 = sshll.u32 1, 4
    %s4 = ssub.s32 %s3, 1
    %v5 = vld [vmem:[%s0] sm:%s4]
    %6 = vst [vmem:[#allocation1] sm:%s4] %v5
    %v7 = vld [vmem:[#allocation1] sm:$0x1]
    %vm8 = vcmask 31744
    %9 = vst.msk [vmem:[#allocation0] sm:$0x1] %vm8, %v7
    %s10 = scalar_lea.vmem [#allocation1], 3
    %v11 = vld [vmem:[%s10] sm:$0x1]
    %12 = vrot.lane.b32.xlu0 %v11, 12
    %v13 = vpop.permute.xlu0 %12
    %vm14 = vcmask 130144
    %15 = vst.msk [vmem:[#allocation0] sm:$0x1] %vm14, %v13
    %s16 = scalar_lea.vmem [#allocation1], 2
    %v17 = vld [vmem:[%s16] sm:$0x1]
    %18 = vrot.lane.b32.xlu0 %v17, 8
    %v19 = vpop.permute.xlu0 %18
    %vm20 = vcmask 97344
    %21 = vst.msk [vmem:[#allocation0] sm:$0x1] %vm20, %v19
    %s22 = scalar_lea.vmem [#allocation1], 1
    %v23 = vld [vmem:[%s22] sm:$0x1]
    %24 = vrot.lane.b32.xlu0 %v23, 4
    %v25 = vpop.permute.xlu0 %24
    %vm26 = vcmask 64544
    %27 = vst.msk [vmem:[#allocation0] sm:$0x1] %vm26, %v25
    %s29 = sshll.u32 1, 1
    %s30 = ssub.s32 %s29, 1
    %v32 = vld [vmem:[#allocation0] sm:%s30]
    %s33 = sshll.u32 1, 1
    %s34 = ssub.s32 %s33, 1
    %35 = vst [vmem:[%s1] sm:%s34] %v32

// kernel: upsample_reshape_eval.1
$region0: #{upsample_reshape_eval.1}
  #allocation0 [shape = 'u32[]', space=smem, size = 0x4, offset = 0x4, fixed_abs, tag = 'smem constant byte address 0x4 - core index']
  #allocation1 [shape = 'u32[144,128]{1,0:T(1,128)}', space=vmem, size = 0x12000, scoped, tag = 'internal scratch']
  #allocation2 [shape = 'f32[64,16]{1,0:T(8,128)}', space=vmem, size = 0x8000, scoped, tag = 'scratch operand']
  %s0 = inlined_call_operand.vmem [shape: f32[2,80,12], index: 0, kind: input, shape index: {}]
  %s1 = inlined_call_operand.vmem [shape: f32[3,12,16], index: 1, kind: input, shape index: {}]
  %s2 = inlined_call_operand.vmem [shape: f32[1,16], index: 2, kind: input, shape index: {}]
  %s3 = inlined_call_operand.vmem [shape: f32[16,2,8,8], index: 3, kind: output, shape index: {}]
  %s4 = sld [smem:[#allocation0]]
  $region45: #{upsample_reshape_eval.1} parent=0
    _
  %s6 = ssub.s32 1, %s4
  %s7 = scalar_select 0, %s6, %s4
  loop: start=0, step=1, limit=4
  $region2: #{upsample_reshape_eval.1} parent=0 // loop_pre_header
    _
  $region3: #{upsample_reshape_eval.1} parent=0 // loop_header
    %s9 = sphi 0, %s13
    %p10 = scmp.ge.s32.totalorder %s9, 4
    %s19 = sphi 0, %s21
    %s22 = sphi 0, %s19
    %s23 = sphi 0, %s22
    %s39 = sphi 0, %s23
    %s43 = sphi 0, %s43
    %s45 = sphi 0, %s43
    %s46 = sphi 0, %s45
    %s60 = sphi 0, %s46
    %s64 = sphi 0, %s64
    %s66 = sphi 0, %s64
    %s67 = sphi 0, %s66
    %s81 = sphi 0, %s67
    %s87 = sphi 0, %s89
    %s90 = sphi 0, %s87
    %s91 = sphi 0, %s90
    %s107 = sphi 0, %s91
  $region4: #{upsample_reshape_eval.1} parent=0 // loop_header_branch
    %12 = sbr.rel (%p10) target = $region8
  $region5: #{upsample_reshape_eval.1} parent=0 // loop_body
    %s14 = ssub.s32 %s9, 1
    %s15 = ssub.s32 %s9, 2
    %s16 = sadd.s32 %s9, 1
    %s17 = ssub.s32 %s9, %s16
    %p18 = scmp.eq.s32.totalorder %s17, 0
    %s20 = sadd.s32 %s19, 1
    %s21 = scalar_select %p18, %s19, %s20
    %p24 = pneg %p18
    %p25 = scmp.eq.s32.totalorder %s9, 1
    %p26 = por %p24, %p25
    %p27 = scmp.ne.s32.totalorder %s19, %s22
    %p28 = scmp.eq.s32.totalorder %s9, 0
    %p29 = por %p27, %p28
    %p30 = scmp.ne.s32.totalorder %s19, %s22
    %p31 = scmp.eq.s32.totalorder %s14, 1
    %p32 = por %p30, %p31
    %p33 = scmp.ne.s32.totalorder %s22, %s23
    %p34 = scmp.eq.s32.totalorder %s14, 0
    %p35 = por %p33, %p34
    %p36 = scmp.ne.s32.totalorder %s22, %s23
    %p37 = scmp.eq.s32.totalorder %s15, 1
    %p38 = por %p36, %p37
    %p40 = scmp.ne.s32.totalorder %s23, %s39
    %p41 = scmp.eq.s32.totalorder %s15, 0
    %p42 = por %p40, %p41
    %s44 = sadd.s32 %s43, 1
    %p47 = scmp.eq.s32.totalorder %s9, 1
    %p48 = scmp.ne.s32.totalorder %s43, %s45
    %p49 = scmp.eq.s32.totalorder %s9, 0
    %p50 = por %p48, %p49
    %p51 = scmp.ne.s32.totalorder %s43, %s45
    %p52 = scmp.eq.s32.totalorder %s14, 1
    %p53 = por %p51, %p52
    %p54 = scmp.ne.s32.totalorder %s45, %s46
    %p55 = scmp.eq.s32.totalorder %s14, 0
    %p56 = por %p54, %p55
    %p57 = scmp.ne.s32.totalorder %s45, %s46
    %p58 = scmp.eq.s32.totalorder %s15, 1
    %p59 = por %p57, %p58
    %p61 = scmp.ne.s32.totalorder %s46, %s60
    %p62 = scmp.eq.s32.totalorder %s15, 0
    %p63 = por %p61, %p62
    %s65 = sadd.s32 %s64, 1
    %p68 = scmp.eq.s32.totalorder %s9, 1
    %p69 = scmp.ne.s32.totalorder %s64, %s66
    %p70 = scmp.eq.s32.totalorder %s9, 0
    %p71 = por %p69, %p70
    %p72 = scmp.ne.s32.totalorder %s64, %s66
    %p73 = scmp.eq.s32.totalorder %s14, 1
    %p74 = por %p72, %p73
    %p75 = scmp.ne.s32.totalorder %s66, %s67
    %p76 = scmp.eq.s32.totalorder %s14, 0
    %p77 = por %p75, %p76
    %p78 = scmp.ne.s32.totalorder %s66, %s67
    %p79 = scmp.eq.s32.totalorder %s15, 1
    %p80 = por %p78, %p79
    %p82 = scmp.ne.s32.totalorder %s67, %s81
    %p83 = scmp.eq.s32.totalorder %s15, 0
    %p84 = por %p82, %p83
    %s85 = ssub.s32 %s9, %s16
    %p86 = scmp.eq.s32.totalorder %s85, 0
    %s88 = sadd.s32 %s87, 1
    %s89 = scalar_select %p86, %s87, %s88
    %p92 = pneg %p86
    %p93 = scmp.eq.s32.totalorder %s9, 1
    %p94 = por %p92, %p93
    %p95 = scmp.ne.s32.totalorder %s87, %s90
    %p96 = scmp.eq.s32.totalorder %s9, 0
    %p97 = por %p95, %p96
    %p98 = scmp.ne.s32.totalorder %s87, %s90
    %p99 = scmp.eq.s32.totalorder %s14, 1
    %p100 = por %p98, %p99
    %p101 = scmp.ne.s32.totalorder %s90, %s91
    %p102 = scmp.eq.s32.totalorder %s14, 0
    %p103 = por %p101, %p102
    %p104 = scmp.ne.s32.totalorder %s90, %s91
    %p105 = scmp.eq.s32.totalorder %s15, 1
    %p106 = por %p104, %p105
    %p108 = scmp.ne.s32.totalorder %s91, %s107
    %p109 = scmp.eq.s32.totalorder %s15, 0
    %p110 = por %p108, %p109
    %p111 = scmp.le.s32.totalorder 1, %s9
    %p112 = scmp.lt.s32.totalorder %s9, 3
    %p113 = pnand %p111, %p112
    %p114 = pneg %p113
    // Predicated region
    $region9: #{upsample_reshape_eval.1} parent=5 // pred_check
      _
    $region10: #{upsample_reshape_eval.1} parent=5 // pred_check_branch
      %116 = sbr.rel (%p113) target = $region12
    $region11: #{upsample_reshape_eval.1} parent=5 // pred_region
      %s117 = ssub.s32 %s9, 1
      // Predicated region
      $region13: #{upsample_reshape_eval.1} parent=11 // pred_check
        %p118 = pneg %p56
      $region14: #{upsample_reshape_eval.1} parent=11 // pred_check_branch
        %120 = sbr.rel (%p118) target = $region16
      $region15: #{upsample_reshape_eval.1} parent=11 // pred_region
        _
      $region16: #{upsample_reshape_eval.1} parent=11 // pred_fallthru
        _
      // Predicated region
      $region17: #{upsample_reshape_eval.1} parent=11 // pred_check
        %p121 = pneg %p77
      $region18: #{upsample_reshape_eval.1} parent=11 // pred_check_branch
        %123 = sbr.rel (%p121) target = $region20
      $region19: #{upsample_reshape_eval.1} parent=11 // pred_region
        _
      $region20: #{upsample_reshape_eval.1} parent=11 // pred_fallthru
        _
    $region12: #{upsample_reshape_eval.1} parent=5 // pred_fallthru
      _
    %p124 = scmp.lt.s32.totalorder %s9, 2
    // Predicated region
    $region21: #{upsample_reshape_eval.1} parent=5 // pred_check
      %p125 = pneg %p124
    $region22: #{upsample_reshape_eval.1} parent=5 // pred_check_branch
      %127 = sbr.rel (%p125) target = $region24
    $region23: #{upsample_reshape_eval.1} parent=5 // pred_region
      // Predicated region
      $region25: #{upsample_reshape_eval.1} parent=23 // pred_check
        %p128 = pneg %p29
      $region26: #{upsample_reshape_eval.1} parent=23 // pred_check_branch
        %130 = sbr.rel (%p128) target = $region28
      $region27: #{upsample_reshape_eval.1} parent=23 // pred_region
        %p131 = scmp.lt.s32.totalorder %s9, 1
        %s132 = scalar_select %p131, %s9, 1
        %s133 = smul.addr %s132, 10
        %s134 = smul.addr %s133, 8
        %s135 = scalar_lea.vmem %s0, %s134
      $region28: #{upsample_reshape_eval.1} parent=23 // pred_fallthru
        _
    $region24: #{upsample_reshape_eval.1} parent=5 // pred_fallthru
      _
    %p136 = scmp.le.s32.totalorder 1, %s9
    %p137 = scmp.lt.s32.totalorder %s9, 3
    %p138 = pnand %p136, %p137
    %p139 = pneg %p138
    // Predicated region
    $region29: #{upsample_reshape_eval.1} parent=5 // pred_check
      _
    $region30: #{upsample_reshape_eval.1} parent=5 // pred_check_branch
      %141 = sbr.rel (%p138) target = $region32
    $region31: #{upsample_reshape_eval.1} parent=5 // pred_region
      %s142 = ssub.s32 %s9, 1
      %p143 = scmp.lt.s32.totalorder %s14, 1
      %s144 = scalar_select %p143, %s14, 1
      %s145 = smul.addr %s144, 10
      %s146 = smul.addr %s145, 8
      %s147 = scalar_lea.vmem %s0, %s146
      %p148 = pneg %p35
      %p149 = pneg %p32
      %p150 = pneg %p56
      %p151 = pneg %p53
      %p152 = pneg %p77
      %p153 = pneg %p74
      %p154 = pneg %p103
      %p155 = pneg %p100
      %s156 = smul.u32 8, %s14
      %p157 = scmp.lt.s32.totalorder %s156, 15
      %s158 = scalar_select %p157, %s156, 15
      %s159 = smul.addr %s158, 2
      %s160 = smul.addr %s159, 8
      %s161 = scalar_lea.vmem %s3, %s160
      %p162 = scmp.lt.s32.totalorder %s14, 1
      %s163 = scalar_select %p162, %s14, 1
      %s164 = smul.addr %s163, 10
      %s165 = smul.addr %s164, 8
      %s166 = scalar_lea.vmem %s0, %s165
      %s167 = smul.u32 8, %s14
      %p168 = scmp.lt.s32.totalorder %s167, 15
      %s169 = scalar_select %p168, %s167, 15
      %s170 = smul.addr %s169, 2
      %s171 = smul.addr %s170, 8
      %s172 = scalar_lea.vmem %s3, %s171
      %s173 = smul.u32 8, %s14
      %v174 = vld [vmem:[%s166] sm:$0xff]
      %v175 = vld [vmem:[%s166 + $0x8] sm:$0xff]
      %v176 = vld [vmem:[%s166 + $0x10] sm:$0xff]
      %v177 = vld [vmem:[%s166 + $0x18] sm:$0xff]
      %v178 = vld [vmem:[%s166 + $0x20] sm:$0xff]
      %v179 = vld [vmem:[%s166 + $0x28] sm:$0xff]
      %v180 = vld [vmem:[%s166 + $0x30] sm:$0xff]
      %v181 = vld [vmem:[%s166 + $0x38] sm:$0xff]
      %v182 = vld [vmem:[%s1] sm:$0xff]
      %v183 = vld [vmem:[%s1 + $0x8] sm:$0xf]
      %vm184 = vcmask 97280
      %v186 = vsel %vm184, %v174, 0
      %v189 = vsel %vm184, %v175, 0
      %v192 = vsel %vm184, %v176, 0
      %v195 = vsel %vm184, %v177, 0
      %v198 = vsel %vm184, %v178, 0
      %v201 = vsel %vm184, %v179, 0
      %v204 = vsel %vm184, %v180, 0
      %v207 = vsel %vm184, %v181, 0
      %vm209 = vcmask 1043456
      %v211 = vsel %vm209, %v183, 0
      %213 = vmatprep.subr.mxu0 0.0
      %214 = vmatpush1.msra.mxu0 0.0
      %215 = vmatprep.subr.mxu0 0.0
      %216 = vmatpush1.msra.mxu0 0.0
      %217 = vmatprep.subr.mxu0 0.0
      %218 = vmatpush1.msra.mxu0 0.0
      %219 = vmatprep.subr.mxu0 0.0
      %220 = vmatpush1.msra.mxu0 0.0
      %221 = vmatprep.subr.mxu0 0.0
      %222 = vmatpush1.msra.mxu0 0.0
      %223 = vmatprep.subr.mxu0 0.0
      %224 = vmatpush1.msra.mxu0 0.0
      %225 = vmatprep.subr.mxu0 0.0
      %226 = vmatpush1.msra.mxu0 0.0
      %227 = vmatprep.subr.mxu0 0.0
      %228 = vmatpush1.msra.mxu0 0.0
      %229 = vmatprep.subr.mxu0 0.0
      %230 = vmatpush1.msra.mxu0 0.0
      %231 = vmatprep.subr.mxu0 0.0
      %232 = vmatpush1.msra.mxu0 0.0
      %233 = vmatprep.subr.mxu0 0.0
      %234 = vmatpush1.msra.mxu0 0.0
      %235 = vmatprep.subr.mxu0 0.0
      %236 = vmatpush1.msra.mxu0 0.0
      %237 = vmatprep.subr.mxu0 0.0
      %238 = vmatpush1.msra.mxu0 0.0
      %239 = vmatprep.subr.mxu0 0.0
      %240 = vmatpush1.msra.mxu0 0.0
      %241 = vmatprep.subr.mxu0 0.0
      %242 = vmatpush1.msra.mxu0 %v211
      %243 = vmatprep.subr.mxu0 0.0
      %244 = vmatpush1.msra.mxu0 %v182
      %245 = vmatprep.subr.mxu0 0.0
      %246 = vmatpush2.msra.mxu0 0.0
      %247 = vmatprep.subr.mxu0 0.0
      %248 = vmatpush2.msra.mxu0 0.0
      %249 = vmatprep.subr.mxu0 0.0
      %250 = vmatpush2.msra.mxu0 0.0
      %251 = vmatprep.subr.mxu0 0.0
      %252 = vmatpush2.msra.mxu0 0.0
      %253 = vmatprep.subr.mxu0 0.0
      %254 = vmatpush2.msra.mxu0 0.0
      %255 = vmatprep.subr.mxu0 0.0
      %256 = vmatpush2.msra.mxu0 0.0
      %257 = vmatprep.subr.mxu0 0.0
      %258 = vmatpush2.msra.mxu0 0.0
      %259 = vmatprep.subr.mxu0 0.0
      %260 = vmatpush2.msra.mxu0 0.0
      %261 = vmatprep.subr.mxu0 0.0
      %262 = vmatpush2.msra.mxu0 0.0
      %263 = vmatprep.subr.mxu0 0.0
      %264 = vmatpush2.msra.mxu0 0.0
      %265 = vmatprep.subr.mxu0 0.0
      %266 = vmatpush2.msra.mxu0 0.0
      %267 = vmatprep.subr.mxu0 0.0
      %268 = vmatpush2.msra.mxu0 0.0
      %269 = vmatprep.subr.mxu0 0.0
      %270 = vmatpush2.msra.mxu0 0.0
      %271 = vmatprep.subr.mxu0 0.0
      %272 = vmatpush2.msra.mxu0 0.0
      %273 = vmatprep.subr.mxu0 0.0
      %274 = vmatpush2.msra.mxu0 0.0
      %275 = vmatprep.subr.mxu0 0.0
      %276 = vmatpush2.msra.mxu0 0.0
      %277 = vmatprep.mubr.f32.mxu0 0.0
      %278 = vmatmul.mubr.f32.gmra.mxu0 %v186
      %v279 = vpop.f32.mrf.mxu0
      %v280 = vadd.f32 0.0, %v279
      %v281 = vpop.f32.mrf.mxu0
      %282 = vmatprep.mubr.f32.mxu0 0.0
      %283 = vmatmul.mubr.f32.gmra.mxu0 %v189
      %v284 = vpop.f32.mrf.mxu0
      %v285 = vadd.f32 0.0, %v284
      %v286 = vpop.f32.mrf.mxu0
      %287 = vmatprep.mubr.f32.mxu0 0.0
      %288 = vmatmul.mubr.f32.gmra.mxu0 %v192
      %v289 = vpop.f32.mrf.mxu0
      %v290 = vadd.f32 0.0, %v289
      %v291 = vpop.f32.mrf.mxu0
      %292 = vmatprep.mubr.f32.mxu0 0.0
      %293 = vmatmul.mubr.f32.gmra.mxu0 %v195
      %v294 = vpop.f32.mrf.mxu0
      %v295 = vadd.f32 0.0, %v294
      %v296 = vpop.f32.mrf.mxu0
      %297 = vmatprep.mubr.f32.mxu0 0.0
      %298 = vmatmul.mubr.f32.gmra.mxu0 %v198
      %v299 = vpop.f32.mrf.mxu0
      %v300 = vadd.f32 0.0, %v299
      %v301 = vpop.f32.mrf.mxu0
      %302 = vmatprep.mubr.f32.mxu0 0.0
      %303 = vmatmul.mubr.f32.gmra.mxu0 %v201
      %v304 = vpop.f32.mrf.mxu0
      %v305 = vadd.f32 0.0, %v304
      %v306 = vpop.f32.mrf.mxu0
      %307 = vmatprep.mubr.f32.mxu0 0.0
      %308 = vmatmul.mubr.f32.gmra.mxu0 %v204
      %v309 = vpop.f32.mrf.mxu0
      %v310 = vadd.f32 0.0, %v309
      %v311 = vpop.f32.mrf.mxu0
      %312 = vmatprep.mubr.f32.mxu0 0.0
      %313 = vmatmul.mubr.f32.gmra.mxu0 %v207
      %v314 = vpop.f32.mrf.mxu0
      %v315 = vadd.f32 0.0, %v314
      %v316 = vpop.f32.mrf.mxu0
      %317 = vdwg.mxu0
      %vm318 = vcmask 130048
      %319 = vst.msk [vmem:[#allocation2] sm:$0xff] %vm318, %v280
      %320 = vst.msk [vmem:[#allocation2 + $0x8] sm:$0xff] %vm318, %v285
      %321 = vst.msk [vmem:[#allocation2 + $0x10] sm:$0xff] %vm318, %v290
      %322 = vst.msk [vmem:[#allocation2 + $0x18] sm:$0xff] %vm318, %v295
      %323 = vst.msk [vmem:[#allocation2 + $0x20] sm:$0xff] %vm318, %v300
      %324 = vst.msk [vmem:[#allocation2 + $0x28] sm:$0xff] %vm318, %v305
      %325 = vst.msk [vmem:[#allocation2 + $0x30] sm:$0xff] %vm318, %v310
      %326 = vst.msk [vmem:[#allocation2 + $0x38] sm:$0xff] %vm318, %v315
      %v327 = vld [vmem:[%s166 + $0x8] sm:$0xff]
      %v328 = vld [vmem:[%s166 + $0x10] sm:$0xff]
      %v329 = vld [vmem:[%s166 + $0x18] sm:$0xff]
      %v330 = vld [vmem:[%s166 + $0x20] sm:$0xff]
      %v331 = vld [vmem:[%s166 + $0x28] sm:$0xff]
      %v332 = vld [vmem:[%s166 + $0x30] sm:$0xff]
      %v333 = vld [vmem:[%s166 + $0x38] sm:$0xff]
      %v334 = vld [vmem:[%s166 + $0x40] sm:$0xff]
      %s335 = scalar_lea.vmem %s1, 16
      %v336 = vld [vmem:[%s335] sm:$0xff]
      %v337 = vld [vmem:[%s335 + $0x8] sm:$0xf]
      %v339 = vsel %vm184, %v327, 0
      %v342 = vsel %vm184, %v328, 0
      %v345 = vsel %vm184, %v329, 0
      %v348 = vsel %vm184, %v330, 0
      %v351 = vsel %vm184, %v331, 0
      %v354 = vsel %vm184, %v332, 0
      %v357 = vsel %vm184, %v333, 0
      %v360 = vsel %vm184, %v334, 0
      %v363 = vsel %vm209, %v337, 0
      %365 = vmatprep.subr.mxu0 0.0
      %366 = vmatpush1.msra.mxu0 0.0
      %367 = vmatprep.subr.mxu0 0.0
      %368 = vmatpush1.msra.mxu0 0.0
      %369 = vmatprep.subr.mxu0 0.0
      %370 = vmatpush1.msra.mxu0 0.0
      %371 = vmatprep.subr.mxu0 0.0
      %372 = vmatpush1.msra.mxu0 0.0
      %373 = vmatprep.subr.mxu0 0.0
      %374 = vmatpush1.msra.mxu0 0.0
      %375 = vmatprep.subr.mxu0 0.0
      %376 = vmatpush1.msra.mxu0 0.0
      %377 = vmatprep.subr.mxu0 0.0
      %378 = vmatpush1.msra.mxu0 0.0
      %379 = vmatprep.subr.mxu0 0.0
      %380 = vmatpush1.msra.mxu0 0.0
      %381 = vmatprep.subr.mxu0 0.0
      %382 = vmatpush1.msra.mxu0 0.0
      %383 = vmatprep.subr.mxu0 0.0
      %384 = vmatpush1.msra.mxu0 0.0
      %385 = vmatprep.subr.mxu0 0.0
      %386 = vmatpush1.msra.mxu0 0.0
      %387 = vmatprep.subr.mxu0 0.0
      %388 = vmatpush1.msra.mxu0 0.0
      %389 = vmatprep.subr.mxu0 0.0
      %390 = vmatpush1.msra.mxu0 0.0
      %391 = vmatprep.subr.mxu0 0.0
      %392 = vmatpush1.msra.mxu0 0.0
      %393 = vmatprep.subr.mxu0 0.0
      %394 = vmatpush1.msra.mxu0 %v363
      %395 = vmatprep.subr.mxu0 0.0
      %396 = vmatpush1.msra.mxu0 %v336
      %397 = vmatprep.subr.mxu0 0.0
      %398 = vmatpush2.msra.mxu0 0.0
      %399 = vmatprep.subr.mxu0 0.0
      %400 = vmatpush2.msra.mxu0 0.0
      %401 = vmatprep.subr.mxu0 0.0
      %402 = vmatpush2.msra.mxu0 0.0
      %403 = vmatprep.subr.mxu0 0.0
      %404 = vmatpush2.msra.mxu0 0.0
      %405 = vmatprep.subr.mxu0 0.0
      %406 = vmatpush2.msra.mxu0 0.0
      %407 = vmatprep.subr.mxu0 0.0
      %408 = vmatpush2.msra.mxu0 0.0
      %409 = vmatprep.subr.mxu0 0.0
      %410 = vmatpush2.msra.mxu0 0.0
      %411 = vmatprep.subr.mxu0 0.0
      %412 = vmatpush2.msra.mxu0 0.0
      %413 = vmatprep.subr.mxu0 0.0
      %414 = vmatpush2.msra.mxu0 0.0
      %415 = vmatprep.subr.mxu0 0.0
      %416 = vmatpush2.msra.mxu0 0.0
      %417 = vmatprep.subr.mxu0 0.0
      %418 = vmatpush2.msra.mxu0 0.0
      %419 = vmatprep.subr.mxu0 0.0
      %420 = vmatpush2.msra.mxu0 0.0
      %421 = vmatprep.subr.mxu0 0.0
      %422 = vmatpush2.msra.mxu0 0.0
      %423 = vmatprep.subr.mxu0 0.0
      %424 = vmatpush2.msra.mxu0 0.0
      %425 = vmatprep.subr.mxu0 0.0
      %426 = vmatpush2.msra.mxu0 0.0
      %427 = vmatprep.subr.mxu0 0.0
      %428 = vmatpush2.msra.mxu0 0.0
      %429 = vmatprep.mubr.f32.mxu0 0.0
      %430 = vmatmul.mubr.f32.gmra.mxu0 %v339
      %v431 = vpop.f32.mrf.mxu0
      %v432 = vadd.f32 0.0, %v431
      %v433 = vpop.f32.mrf.mxu0
      %434 = vmatprep.mubr.f32.mxu0 0.0
      %435 = vmatmul.mubr.f32.gmra.mxu0 %v342
      %v436 = vpop.f32.mrf.mxu0
      %v437 = vadd.f32 0.0, %v436
      %v438 = vpop.f32.mrf.mxu0
      %439 = vmatprep.mubr.f32.mxu0 0.0
      %440 = vmatmul.mubr.f32.gmra.mxu0 %v345
      %v441 = vpop.f32.mrf.mxu0
      %v442 = vadd.f32 0.0, %v441
      %v443 = vpop.f32.mrf.mxu0
      %444 = vmatprep.mubr.f32.mxu0 0.0
      %445 = vmatmul.mubr.f32.gmra.mxu0 %v348
      %v446 = vpop.f32.mrf.mxu0
      %v447 = vadd.f32 0.0, %v446
      %v448 = vpop.f32.mrf.mxu0
      %449 = vmatprep.mubr.f32.mxu0 0.0
      %450 = vmatmul.mubr.f32.gmra.mxu0 %v351
      %v451 = vpop.f32.mrf.mxu0
      %v452 = vadd.f32 0.0, %v451
      %v453 = vpop.f32.mrf.mxu0
      %454 = vmatprep.mubr.f32.mxu0 0.0
      %455 = vmatmul.mubr.f32.gmra.mxu0 %v354
      %v456 = vpop.f32.mrf.mxu0
      %v457 = vadd.f32 0.0, %v456
      %v458 = vpop.f32.mrf.mxu0
      %459 = vmatprep.mubr.f32.mxu0 0.0
      %460 = vmatmul.mubr.f32.gmra.mxu0 %v357
      %v461 = vpop.f32.mrf.mxu0
      %v462 = vadd.f32 0.0, %v461
      %v463 = vpop.f32.mrf.mxu0
      %464 = vmatprep.mubr.f32.mxu0 0.0
      %465 = vmatmul.mubr.f32.gmra.mxu0 %v360
      %v466 = vpop.f32.mrf.mxu0
      %v467 = vadd.f32 0.0, %v466
      %v468 = vpop.f32.mrf.mxu0
      %469 = vdwg.mxu0
      %v470 = vld [vmem:[#allocation2] sm:$0xff]
      %v471 = vld [vmem:[#allocation2 + $0x8] sm:$0xff]
      %v472 = vld [vmem:[#allocation2 + $0x10] sm:$0xff]
      %v473 = vld [vmem:[#allocation2 + $0x18] sm:$0xff]
      %v474 = vld [vmem:[#allocation2 + $0x20] sm:$0xff]
      %v475 = vld [vmem:[#allocation2 + $0x28] sm:$0xff]
      %v476 = vld [vmem:[#allocation2 + $0x30] sm:$0xff]
      %v477 = vld [vmem:[#allocation2 + $0x38] sm:$0xff]
      %v478 = vadd.f32 %v470, %v432
      %v479 = vadd.f32 %v471, %v437
      %v480 = vadd.f32 %v472, %v442
      %v481 = vadd.f32 %v473, %v447
      %v482 = vadd.f32 %v474, %v452
      %v483 = vadd.f32 %v475, %v457
      %v484 = vadd.f32 %v476, %v462
      %v485 = vadd.f32 %v477, %v467
      %486 = vst.msk [vmem:[#allocation2] sm:$0xff] %vm318, %v478
      %487 = vst.msk [vmem:[#allocation2 + $0x8] sm:$0xff] %vm318, %v479
      %488 = vst.msk [vmem:[#allocation2 + $0x10] sm:$0xff] %vm318, %v480
      %489 = vst.msk [vmem:[#allocation2 + $0x18] sm:$0xff] %vm318, %v481
      %490 = vst.msk [vmem:[#allocation2 + $0x20] sm:$0xff] %vm318, %v482
      %491 = vst.msk [vmem:[#allocation2 + $0x28] sm:$0xff] %vm318, %v483
      %492 = vst.msk [vmem:[#allocation2 + $0x30] sm:$0xff] %vm318, %v484
      %493 = vst.msk [vmem:[#allocation2 + $0x38] sm:$0xff] %vm318, %v485
      %v494 = vld [vmem:[%s166 + $0x10] sm:$0xff]
      %v495 = vld [vmem:[%s166 + $0x18] sm:$0xff]
      %v496 = vld [vmem:[%s166 + $0x20] sm:$0xff]
      %v497 = vld [vmem:[%s166 + $0x28] sm:$0xff]
      %v498 = vld [vmem:[%s166 + $0x30] sm:$0xff]
      %v499 = vld [vmem:[%s166 + $0x38] sm:$0xff]
      %v500 = vld [vmem:[%s166 + $0x40] sm:$0xff]
      %v501 = vld [vmem:[%s166 + $0x48] sm:$0xff]
      %s502 = scalar_lea.vmem %s1, 32
      %v503 = vld [vmem:[%s502] sm:$0xff]
      %v504 = vld [vmem:[%s502 + $0x8] sm:$0xf]
      %v506 = vsel %vm184, %v494, 0
      %v509 = vsel %vm184, %v495, 0
      %v512 = vsel %vm184, %v496, 0
      %v515 = vsel %vm184, %v497, 0
      %v518 = vsel %vm184, %v498, 0
      %v521 = vsel %vm184, %v499, 0
      %v524 = vsel %vm184, %v500, 0
      %v527 = vsel %vm184, %v501, 0
      %v530 = vsel %vm209, %v504, 0
      %532 = vmatprep.subr.mxu0 0.0
      %533 = vmatpush1.msra.mxu0 0.0
      %534 = vmatprep.subr.mxu0 0.0
      %535 = vmatpush1.msra.mxu0 0.0
      %536 = vmatprep.subr.mxu0 0.0
      %537 = vmatpush1.msra.mxu0 0.0
      %538 = vmatprep.subr.mxu0 0.0
      %539 = vmatpush1.msra.mxu0 0.0
      %540 = vmatprep.subr.mxu0 0.0
      %541 = vmatpush1.msra.mxu0 0.0
      %542 = vmatprep.subr.mxu0 0.0
      %543 = vmatpush1.msra.mxu0 0.0
      %544 = vmatprep.subr.mxu0 0.0
      %545 = vmatpush1.msra.mxu0 0.0
      %546 = vmatprep.subr.mxu0 0.0
      %547 = vmatpush1.msra.mxu0 0.0
      %548 = vmatprep.subr.mxu0 0.0
      %549 = vmatpush1.msra.mxu0 0.0
      %550 = vmatprep.subr.mxu0 0.0
      %551 = vmatpush1.msra.mxu0 0.0
      %552 = vmatprep.subr.mxu0 0.0
      %553 = vmatpush1.msra.mxu0 0.0
      %554 = vmatprep.subr.mxu0 0.0
      %555 = vmatpush1.msra.mxu0 0.0
      %556 = vmatprep.subr.mxu0 0.0
      %557 = vmatpush1.msra.mxu0 0.0
      %558 = vmatprep.subr.mxu0 0.0
      %559 = vmatpush1.msra.mxu0 0.0
      %560 = vmatprep.subr.mxu0 0.0
      %561 = vmatpush1.msra.mxu0 %v530
      %562 = vmatprep.subr.mxu0 0.0
      %563 = vmatpush1.msra.mxu0 %v503
      %564 = vmatprep.subr.mxu0 0.0
      %565 = vmatpush2.msra.mxu0 0.0
      %566 = vmatprep.subr.mxu0 0.0
      %567 = vmatpush2.msra.mxu0 0.0
      %568 = vmatprep.subr.mxu0 0.0
      %569 = vmatpush2.msra.mxu0 0.0
      %570 = vmatprep.subr.mxu0 0.0
      %571 = vmatpush2.msra.mxu0 0.0
      %572 = vmatprep.subr.mxu0 0.0
      %573 = vmatpush2.msra.mxu0 0.0
      %574 = vmatprep.subr.mxu0 0.0
      %575 = vmatpush2.msra.mxu0 0.0
      %576 = vmatprep.subr.mxu0 0.0
      %577 = vmatpush2.msra.mxu0 0.0
      %578 = vmatprep.subr.mxu0 0.0
      %579 = vmatpush2.msra.mxu0 0.0
      %580 = vmatprep.subr.mxu0 0.0
      %581 = vmatpush2.msra.mxu0 0.0
      %582 = vmatprep.subr.mxu0 0.0
      %583 = vmatpush2.msra.mxu0 0.0
      %584 = vmatprep.subr.mxu0 0.0
      %585 = vmatpush2.msra.mxu0 0.0
      %586 = vmatprep.subr.mxu0 0.0
      %587 = vmatpush2.msra.mxu0 0.0
      %588 = vmatprep.subr.mxu0 0.0
      %589 = vmatpush2.msra.mxu0 0.0
      %590 = vmatprep.subr.mxu0 0.0
      %591 = vmatpush2.msra.mxu0 0.0
      %592 = vmatprep.subr.mxu0 0.0
      %593 = vmatpush2.msra.mxu0 0.0
      %594 = vmatprep.subr.mxu0 0.0
      %595 = vmatpush2.msra.mxu0 0.0
      %596 = vmatprep.mubr.f32.mxu0 0.0
      %597 = vmatmul.mubr.f32.gmra.mxu0 %v506
      %v598 = vpop.f32.mrf.mxu0
      %v599 = vadd.f32 0.0, %v598
      %v600 = vpop.f32.mrf.mxu0
      %601 = vmatprep.mubr.f32.mxu0 0.0
      %602 = vmatmul.mubr.f32.gmra.mxu0 %v509
      %v603 = vpop.f32.mrf.mxu0
      %v604 = vadd.f32 0.0, %v603
      %v605 = vpop.f32.mrf.mxu0
      %606 = vmatprep.mubr.f32.mxu0 0.0
      %607 = vmatmul.mubr.f32.gmra.mxu0 %v512
      %v608 = vpop.f32.mrf.mxu0
      %v609 = vadd.f32 0.0, %v608
      %v610 = vpop.f32.mrf.mxu0
      %611 = vmatprep.mubr.f32.mxu0 0.0
      %612 = vmatmul.mubr.f32.gmra.mxu0 %v515
      %v613 = vpop.f32.mrf.mxu0
      %v614 = vadd.f32 0.0, %v613
      %v615 = vpop.f32.mrf.mxu0
      %616 = vmatprep.mubr.f32.mxu0 0.0
      %617 = vmatmul.mubr.f32.gmra.mxu0 %v518
      %v618 = vpop.f32.mrf.mxu0
      %v619 = vadd.f32 0.0, %v618
      %v620 = vpop.f32.mrf.mxu0
      %621 = vmatprep.mubr.f32.mxu0 0.0
      %622 = vmatmul.mubr.f32.gmra.mxu0 %v521
      %v623 = vpop.f32.mrf.mxu0
      %v624 = vadd.f32 0.0, %v623
      %v625 = vpop.f32.mrf.mxu0
      %626 = vmatprep.mubr.f32.mxu0 0.0
      %627 = vmatmul.mubr.f32.gmra.mxu0 %v524
      %v628 = vpop.f32.mrf.mxu0
      %v629 = vadd.f32 0.0, %v628
      %v630 = vpop.f32.mrf.mxu0
      %631 = vmatprep.mubr.f32.mxu0 0.0
      %632 = vmatmul.mubr.f32.gmra.mxu0 %v527
      %v633 = vpop.f32.mrf.mxu0
      %v634 = vadd.f32 0.0, %v633
      %v635 = vpop.f32.mrf.mxu0
      %636 = vdwg.mxu0
      %v637 = vld [vmem:[#allocation2] sm:$0xff]
      %v638 = vld [vmem:[#allocation2 + $0x8] sm:$0xff]
      %v639 = vld [vmem:[#allocation2 + $0x10] sm:$0xff]
      %v640 = vld [vmem:[#allocation2 + $0x18] sm:$0xff]
      %v641 = vld [vmem:[#allocation2 + $0x20] sm:$0xff]
      %v642 = vld [vmem:[#allocation2 + $0x28] sm:$0xff]
      %v643 = vld [vmem:[#allocation2 + $0x30] sm:$0xff]
      %v644 = vld [vmem:[#allocation2 + $0x38] sm:$0xff]
      %v645 = vadd.f32 %v637, %v599
      %v646 = vadd.f32 %v638, %v604
      %v647 = vadd.f32 %v639, %v609
      %v648 = vadd.f32 %v640, %v614
      %v649 = vadd.f32 %v641, %v619
      %v650 = vadd.f32 %v642, %v624
      %v651 = vadd.f32 %v643, %v629
      %v652 = vadd.f32 %v644, %v634
      %653 = vst.msk [vmem:[#allocation2] sm:$0xff] %vm318, %v645
      %654 = vst.msk [vmem:[#allocation2 + $0x8] sm:$0xff] %vm318, %v646
      %655 = vst.msk [vmem:[#allocation2 + $0x10] sm:$0xff] %vm318, %v647
      %656 = vst.msk [vmem:[#allocation2 + $0x18] sm:$0xff] %vm318, %v648
      %657 = vst.msk [vmem:[#allocation2 + $0x20] sm:$0xff] %vm318, %v649
      %658 = vst.msk [vmem:[#allocation2 + $0x28] sm:$0xff] %vm318, %v650
      %659 = vst.msk [vmem:[#allocation2 + $0x30] sm:$0xff] %vm318, %v651
      %660 = vst.msk [vmem:[#allocation2 + $0x38] sm:$0xff] %vm318, %v652
      %v661 = vld [vmem:[#allocation2] sm:$0xff]
      %v662 = vld [vmem:[#allocation2 + $0x8] sm:$0xff]
      %v663 = vld [vmem:[#allocation2 + $0x10] sm:$0xff]
      %v664 = vld [vmem:[#allocation2 + $0x18] sm:$0xff]
      %v665 = vld [vmem:[#allocation2 + $0x20] sm:$0xff]
      %v666 = vld [vmem:[#allocation2 + $0x28] sm:$0xff]
      %v667 = vld [vmem:[#allocation2 + $0x30] sm:$0xff]
      %v668 = vld [vmem:[#allocation2 + $0x38] sm:$0xff]
      %v669 = vld [vmem:[%s2] sm:$0x1]
      %v671 = vlaneseq
      %v672 = vshrl.u32 %v671, 7
      %v673 = vsub.s32 0, %v672
      %v674 = vrot.slane %v669, %v673
      %v676 = vadd.f32 %v661, %v674
      %v677 = vadd.f32 %v662, %v674
      %v678 = vadd.f32 %v663, %v674
      %v679 = vadd.f32 %v664, %v674
      %v680 = vadd.f32 %v665, %v674
      %v681 = vadd.f32 %v666, %v674
      %v682 = vadd.f32 %v667, %v674
      %v683 = vadd.f32 %v668, %v674
      %v684 = vmul.f32 %v676, 0.5
      %v685 = vmul.f32 %v677, 0.5
      %v686 = vmul.f32 %v678, 0.5
      %v687 = vmul.f32 %v679, 0.5
      %v688 = vmul.f32 %v680, 0.5
      %v689 = vmul.f32 %v681, 0.5
      %v690 = vmul.f32 %v682, 0.5
      %v691 = vmul.f32 %v683, 0.5
      %v692 = vmul.f32 %v676, 0.044715
      %v693 = vmul.f32 %v677, 0.044715
      %v694 = vmul.f32 %v678, 0.044715
      %v695 = vmul.f32 %v679, 0.044715
      %v696 = vmul.f32 %v680, 0.044715
      %v697 = vmul.f32 %v681, 0.044715
      %v698 = vmul.f32 %v682, 0.044715
      %v699 = vmul.f32 %v683, 0.044715
      %v700 = vmul.f32 %v692, %v676
      %v701 = vmul.f32 %v693, %v677
      %v702 = vmul.f32 %v694, %v678
      %v703 = vmul.f32 %v695, %v679
      %v704 = vmul.f32 %v696, %v680
      %v705 = vmul.f32 %v697, %v681
      %v706 = vmul.f32 %v698, %v682
      %v707 = vmul.f32 %v699, %v683
      %v708 = vmul.f32 %v700, %v676
      %v709 = vmul.f32 %v701, %v677
      %v710 = vmul.f32 %v702, %v678
      %v711 = vmul.f32 %v703, %v679
      %v712 = vmul.f32 %v704, %v680
      %v713 = vmul.f32 %v705, %v681
      %v714 = vmul.f32 %v706, %v682
      %v715 = vmul.f32 %v707, %v683
      %v716 = vadd.f32 %v676, %v708
      %v717 = vadd.f32 %v677, %v709
      %v718 = vadd.f32 %v678, %v710
      %v719 = vadd.f32 %v679, %v711
      %v720 = vadd.f32 %v680, %v712
      %v721 = vadd.f32 %v681, %v713
      %v722 = vadd.f32 %v682, %v714
      %v723 = vadd.f32 %v683, %v715
      %v724 = vmul.f32 %v716, 0.7978846
      %v725 = vmul.f32 %v717, 0.7978846
      %v726 = vmul.f32 %v718, 0.7978846
      %v727 = vmul.f32 %v719, 0.7978846
      %v728 = vmul.f32 %v720, 0.7978846
      %v729 = vmul.f32 %v721, 0.7978846
      %v730 = vmul.f32 %v722, 0.7978846
      %v731 = vmul.f32 %v723, 0.7978846
      %v732 = vtanh.pop %v724
      %v733 = vtanh.pop %v725
      %v734 = vtanh.pop %v726
      %v735 = vtanh.pop %v727
      %v736 = vtanh.pop %v728
      %v737 = vtanh.pop %v729
      %v738 = vtanh.pop %v730
      %v739 = vtanh.pop %v731
      %v740 = vadd.f32 %v732, 1.0
      %v741 = vadd.f32 %v733, 1.0
      %v742 = vadd.f32 %v734, 1.0
      %v743 = vadd.f32 %v735, 1.0
      %v744 = vadd.f32 %v736, 1.0
      %v745 = vadd.f32 %v737, 1.0
      %v746 = vadd.f32 %v738, 1.0
      %v747 = vadd.f32 %v739, 1.0
      %v748 = vmul.f32 %v684, %v740
      %v749 = vmul.f32 %v685, %v741
      %v750 = vmul.f32 %v686, %v742
      %v751 = vmul.f32 %v687, %v743
      %v752 = vmul.f32 %v688, %v744
      %v753 = vmul.f32 %v689, %v745
      %v754 = vmul.f32 %v690, %v746
      %v755 = vmul.f32 %v691, %v747
      %vm756 = vcmask 64512
      %757 = vst.msk [vmem:[%s172] sm:$0xff] %vm756, %v748
      %758 = vst.msk [vmem:[%s172 + $0x10] sm:$0xff] %vm756, %v749
      %759 = vst.msk [vmem:[%s172 + $0x20] sm:$0xff] %vm756, %v750
      %760 = vst.msk [vmem:[%s172 + $0x30] sm:$0xff] %vm756, %v751
      %761 = vst.msk [vmem:[%s172 + $0x40] sm:$0xff] %vm756, %v752
      %762 = vst.msk [vmem:[%s172 + $0x50] sm:$0xff] %vm756, %v753
      %763 = vst.msk [vmem:[%s172 + $0x60] sm:$0xff] %vm756, %v754
      %764 = vst.msk [vmem:[%s172 + $0x70] sm:$0xff] %vm756, %v755
      %773 = vrot.lane.b32.xlu0 %v748, 120
      %v774 = vpop.permute.xlu0 %773
      %775 = vrot.lane.b32.xlu0 %v749, 120
      %v776 = vpop.permute.xlu0 %775
      %777 = vrot.lane.b32.xlu0 %v750, 120
      %v778 = vpop.permute.xlu0 %777
      %779 = vrot.lane.b32.xlu0 %v751, 120
      %v780 = vpop.permute.xlu0 %779
      %781 = vrot.lane.b32.xlu0 %v752, 120
      %v782 = vpop.permute.xlu0 %781
      %783 = vrot.lane.b32.xlu0 %v753, 120
      %v784 = vpop.permute.xlu0 %783
      %785 = vrot.lane.b32.xlu0 %v754, 120
      %v786 = vpop.permute.xlu0 %785
      %787 = vrot.lane.b32.xlu0 %v755, 120
      %v788 = vpop.permute.xlu0 %787
      %s797 = scalar_lea.vmem %s172, 8
      %798 = vst.msk [vmem:[%s797] sm:$0xff] %vm756, %v774
      %799 = vst.msk [vmem:[%s797 + $0x10] sm:$0xff] %vm756, %v776
      %800 = vst.msk [vmem:[%s797 + $0x20] sm:$0xff] %vm756, %v778
      %801 = vst.msk [vmem:[%s797 + $0x30] sm:$0xff] %vm756, %v780
      %802 = vst.msk [vmem:[%s797 + $0x40] sm:$0xff] %vm756, %v782
      %803 = vst.msk [vmem:[%s797 + $0x50] sm:$0xff] %vm756, %v784
      %804 = vst.msk [vmem:[%s797 + $0x60] sm:$0xff] %vm756, %v786
      %805 = vst.msk [vmem:[%s797 + $0x70] sm:$0xff] %vm756, %v788
      %s806 = smul.u32 8, %s14
      %p807 = scmp.lt.s32.totalorder %s806, 15
      %s808 = scalar_select %p807, %s806, 15
      %s809 = smul.addr %s808, 2
      %s810 = smul.addr %s809, 8
      %s811 = scalar_lea.vmem %s3, %s810
      // Predicated region
      $region33: #{upsample_reshape_eval.1} parent=31 // pred_check
        %p812 = pneg %p100
      $region34: #{upsample_reshape_eval.1} parent=31 // pred_check_branch
        %814 = sbr.rel (%p812) target = $region36
      $region35: #{upsample_reshape_eval.1} parent=31 // pred_region
        %s815 = smul.u32 8, %s14
      $region36: #{upsample_reshape_eval.1} parent=31 // pred_fallthru
        _
    $region32: #{upsample_reshape_eval.1} parent=5 // pred_fallthru
      _
    %p816 = scmp.le.s32.totalorder 2, %s9
    // Predicated region
    $region37: #{upsample_reshape_eval.1} parent=5 // pred_check
      %p817 = pneg %p816
    $region38: #{upsample_reshape_eval.1} parent=5 // pred_check_branch
      %819 = sbr.rel (%p817) target = $region40
    $region39: #{upsample_reshape_eval.1} parent=5 // pred_region
      %s820 = ssub.s32 %s9, 2
      // Predicated region
      $region41: #{upsample_reshape_eval.1} parent=39 // pred_check
        %p821 = pneg %p106
      $region42: #{upsample_reshape_eval.1} parent=39 // pred_check_branch
        %823 = sbr.rel (%p821) target = $region44
      $region43: #{upsample_reshape_eval.1} parent=39 // pred_region
        %s824 = smul.u32 8, %s15
        %p825 = scmp.lt.s32.totalorder %s824, 15
        %s826 = scalar_select %p825, %s824, 15
        %s827 = smul.addr %s826, 2
        %s828 = smul.addr %s827, 8
        %s829 = scalar_lea.vmem %s3, %s828
      $region44: #{upsample_reshape_eval.1} parent=39 // pred_fallthru
        _
    $region40: #{upsample_reshape_eval.1} parent=5 // pred_fallthru
      _
  $region6: #{upsample_reshape_eval.1} parent=0 // loop_footer
    %s13 = sadd.s32 1, %s9
  $region7: #{upsample_reshape_eval.1} parent=0 // loop_footer_branch
    %8 = sbr.rel target = $region3
  $region8: #{upsample_reshape_eval.1} parent=0 // loop_exit
    _

</llo_original>
